<compile_context>
chip_gen: v5e
topology: v5e:2x2
jax: 0.10.0
libtpu: 0.0.40
codegen_flags: <defaults>
</compile_context>

<pallas_src>
import math

import jax
import jax.numpy as jnp
from jax.experimental import pallas as pl
from jax.experimental.pallas import tpu as pltpu


def _round_up(x, m):
    return ((x + m - 1) // m) * m


def make_pe_tables(d_model):
    """Per-lane tables so the kernel can synthesize pe with a single sin():
         pe[pos, d] = sin(pos * inv_freq[d] + phase[d])
       which equals sin(pos*div_term[d//2]) for even d and cos(...) for odd d
       (exactly the table the PyTorch module registers)."""
    assert d_model % 2 == 0, "d_model must be even (same constraint as the torch module)"
    j = jnp.arange(0, d_model, 2, dtype=jnp.float32)
    div_term = jnp.exp(j * (-math.log(10000.0) / d_model))            # [D/2]
    inv_freq = jnp.repeat(div_term, 2)[None, :]                       # [1, D]
    phase = jnp.tile(jnp.array([0.0, math.pi / 2.0], jnp.float32),
                     d_model // 2)[None, :]                           # [1, D]
    return inv_freq, phase


def make_positional_encoding_table(max_len, d_model):
    """The exact fp32 table the PyTorch module registers (squeezed to [max_len, D]).
    Used only as the test reference."""
    assert d_model % 2 == 0
    position = jnp.arange(max_len, dtype=jnp.float32)[:, None]
    div_term = jnp.exp(jnp.arange(0, d_model, 2, dtype=jnp.float32)
                       * (-math.log(10000.0) / d_model))
    pe = jnp.zeros((max_len, d_model), jnp.float32)
    pe = pe.at[:, 0::2].set(jnp.sin(position * div_term))
    pe = pe.at[:, 1::2].set(jnp.cos(position * div_term))
    return pe


def _pos_enc_kernel(pos_ref, invf_ref, phase_ref, x_ref, o_ref):
    # pos_ref  : [TR, 1] f32  sequence position of each flattened (seq, batch) row
    # invf_ref : [1,  D] f32  per-lane inverse frequency
    # phase_ref: [1,  D] f32  0 on even lanes (sin), pi/2 on odd lanes (cos)
    # x_ref    : [TR, D]      input tile (rows = seq*batch, lanes = d_model)
    # o_ref    : [TR, D] f32  output tile (PyTorch promotes x + fp32 pe buffer)
    pe = jnp.sin(pos_ref[...] * invf_ref[...] + phase_ref[...])   # [TR, D], EUP
    o_ref[...] = (x_ref[...].astype(jnp.float32) + pe).astype(o_ref.dtype)


def positional_encoding(x, inv_freq, phase, pos=None, *, row_tile=None,
                        vmem_limit_bytes=48 * 1024 * 1024):
    """x: [seq_len, batch, d_model] (same layout as the PyTorch module)."""
    S, B, D = x.shape
    assert inv_freq.shape == (1, D) and phase.shape == (1, D)
    out_dtype = jnp.promote_types(x.dtype, jnp.float32)   # torch: x + fp32 buffer
    R = S * B

    # Dense 2-D view: rows = flattened (seq, batch), lanes = d_model (free bitcast).
    x2 = x.reshape(R, D)

    if pos is None:
        # Sequence position of every flattened row; R*4 bytes, negligible vs x.
        pos = jnp.repeat(jnp.arange(S, dtype=jnp.float32), B)[:, None]   # [R, 1]

    if row_tile is None:
        if R <= 8:
            row_tile = R                                     # single full block
        else:
            # Largest row tile whose double-buffered live blocks fit ~half the
            # VMEM limit. Account for lane padding of D and of the [TR,1] pos
            # column (padded to a full 128-lane tile -> ~512 B per 8 rows).
            lane_pad = _round_up(max(D, 128), 128)
            row_bytes = (lane_pad * (jnp.dtype(x.dtype).itemsize
                                     + jnp.dtype(out_dtype).itemsize)
                         + 512)
            row_tile = (vmem_limit_bytes // 2) // (2 * row_bytes)
            # >= 2 grid steps so v7x megacore can split the parallel axis
            # across both TensorCores.
            row_tile = min(row_tile, _round_up(pl.cdiv(R, 2), 8))
            row_tile = int(max(8, (row_tile // 8) * 8))

    grid = (pl.cdiv(R, row_tile),)

    out2 = pl.pallas_call(
        _pos_enc_kernel,
        out_shape=jax.ShapeDtypeStruct((R, D), out_dtype),
        grid=grid,
        in_specs=[
            pl.BlockSpec((row_tile, 1), lambda i: (i, 0)),   # pos column
            pl.BlockSpec((1, D), lambda i: (0, 0)),          # inv_freq (fetched once)
            pl.BlockSpec((1, D), lambda i: (0, 0)),          # phase    (fetched once)
            pl.BlockSpec((row_tile, D), lambda i: (i, 0)),   # x rows
        ],
        out_specs=pl.BlockSpec((row_tile, D), lambda i: (i, 0)),
        compiler_params=pltpu.CompilerParams(
            dimension_semantics=("parallel",),
            vmem_limit_bytes=vmem_limit_bytes),
    )(pos, inv_freq, phase, x2)

    return out2.reshape(S, B, D)


def _ref(x, pe_table):
    S = x.shape[0]
    return x + pe_table[:S][:, None, :]    # fp32 table -> fp32 result (torch promotion)


if __name__ == "__main__":
    key = jax.random.PRNGKey(0)

    # Small shape consistent with the module's forward: [seq_len, batch, d_model]
    S, B, D = 8, 2, 32
    inv_freq, phase = make_pe_tables(D)
    pe_table = make_positional_encoding_table(5000, D)

    x = jax.random.normal(key, (S, B, D), jnp.float32)
    out = jax.block_until_ready(positional_encoding(x, inv_freq, phase))
    ref = _ref(x, pe_table)
    assert out.shape == (S, B, D) and out.dtype == jnp.float32
    assert jnp.allclose(out, ref, atol=1e-4, rtol=1e-4), "f32 mismatch vs reference"

    # Larger check: multi-step row tiling (grid > 1), bf16 input -> fp32 output
    # (matching PyTorch type promotion against the fp32 pe buffer).
    S2, B2, D2 = 256, 4, 256
    inv_freq2, phase2 = make_pe_tables(D2)
    pe_table2 = make_positional_encoding_table(5000, D2)
    x2 = jax.random.normal(jax.random.PRNGKey(1), (S2, B2, D2), jnp.float32)
    x2 = x2.astype(jnp.bfloat16)
    out2 = jax.block_until_ready(
        positional_encoding(x2, inv_freq2, phase2, row_tile=256))
    ref2 = _ref(x2, pe_table2)
    assert out2.shape == (S2, B2, D2) and out2.dtype == jnp.float32
    assert jnp.allclose(out2, ref2, atol=1e-3, rtol=1e-3), "bf16 mismatch vs reference"

    # Auto-tiling path on the larger shape as well (exercises the VMEM heuristic).
    out3 = jax.block_until_ready(positional_encoding(x2, inv_freq2, phase2))
    assert jnp.allclose(out3, ref2, atol=1e-3, rtol=1e-3), "auto-tile mismatch"

    print("KERNEL_OK")
</pallas_src>

<mosaic_0001>
module attributes {stable_mosaic.version = 11 : i64} {
  func.func @_pos_enc_kernel(%arg0: i32, %arg1: memref<8x1xf32, #tpu.memory_space<vmem>>, %arg2: memref<1x32xf32, #tpu.memory_space<vmem>>, %arg3: memref<1x32xf32, #tpu.memory_space<vmem>>, %arg4: memref<8x32xf32, #tpu.memory_space<vmem>>, %arg5: memref<8x32xf32, #tpu.memory_space<vmem>>) attributes {dimension_semantics = [#tpu.dimension_semantics<parallel>], iteration_bounds = array<i64: 2>, scalar_prefetch = 0 : i64, scratch_operands = 0 : i64, tpu.core_type = #tpu.core_type<tc>, window_params = [{transform_indices = @transform_0, window_bounds = array<i64: 8, 1>}, {pipeline_mode = #tpu.pipeline_mode<synchronous>, transform_indices = @transform_1, window_bounds = array<i64: 1, 32>}, {pipeline_mode = #tpu.pipeline_mode<synchronous>, transform_indices = @transform_2, window_bounds = array<i64: 1, 32>}, {transform_indices = @transform_3, window_bounds = array<i64: 8, 32>}, {transform_indices = @transform_4, window_bounds = array<i64: 8, 32>}]} {
    %c0 = arith.constant 0 : index
    %c0_0 = arith.constant 0 : index
    %0 = vector.load %arg1[%c0, %c0_0] : memref<8x1xf32, #tpu.memory_space<vmem>>, vector<8x1xf32>
    %c0_1 = arith.constant 0 : index
    %c0_2 = arith.constant 0 : index
    %1 = vector.load %arg2[%c0_1, %c0_2] : memref<1x32xf32, #tpu.memory_space<vmem>>, vector<1x32xf32>
    %2 = vector.broadcast %0 : vector<8x1xf32> to vector<8x32xf32>
    %3 = vector.broadcast %1 : vector<1x32xf32> to vector<8x32xf32>
    %4 = arith.mulf %2, %3 : vector<8x32xf32>
    %c0_3 = arith.constant 0 : index
    %c0_4 = arith.constant 0 : index
    %5 = vector.load %arg3[%c0_3, %c0_4] : memref<1x32xf32, #tpu.memory_space<vmem>>, vector<1x32xf32>
    %6 = vector.broadcast %5 : vector<1x32xf32> to vector<8x32xf32>
    %7 = arith.addf %4, %6 : vector<8x32xf32>
    %8 = math.sin %7 : vector<8x32xf32>
    %c0_5 = arith.constant 0 : index
    %c0_6 = arith.constant 0 : index
    %9 = vector.load %arg4[%c0_5, %c0_6] : memref<8x32xf32, #tpu.memory_space<vmem>>, vector<8x32xf32>
    %10 = arith.addf %9, %8 : vector<8x32xf32>
    %c0_7 = arith.constant 0 : index
    %c0_8 = arith.constant 0 : index
    %11 = vector.load %arg5[%c0_7, %c0_8] : memref<8x32xf32, #tpu.memory_space<vmem>>, vector<8x32xf32>
    tpu.vector_store %arg5[%c0_7, %c0_8], %10 {strides = array<i32>} : memref<8x32xf32, #tpu.memory_space<vmem>>, vector<8x32xf32>,
    return
  }
  func.func @transform_0(%arg0: i32) -> (i32, i32) {
    %c0_i32 = arith.constant 0 : i32
    %c0_i32_0 = arith.constant 0 : i32
    return %arg0, %c0_i32 : i32, i32
  }
  func.func @transform_1(%arg0: i32) -> (i32, i32) {
    %c0_i32 = arith.constant 0 : i32
    %c0_i32_0 = arith.constant 0 : i32
    %c0_i32_1 = arith.constant 0 : i32
    return %c0_i32, %c0_i32_0 : i32, i32
  }
  func.func @transform_2(%arg0: i32) -> (i32, i32) {
    %c0_i32 = arith.constant 0 : i32
    %c0_i32_0 = arith.constant 0 : i32
    %c0_i32_1 = arith.constant 0 : i32
    return %c0_i32, %c0_i32_0 : i32, i32
  }
  func.func @transform_3(%arg0: i32) -> (i32, i32) {
    %c0_i32 = arith.constant 0 : i32
    %c0_i32_0 = arith.constant 0 : i32
    return %arg0, %c0_i32 : i32, i32
  }
  func.func @transform_4(%arg0: i32) -> (i32, i32) {
    %c0_i32 = arith.constant 0 : i32
    %c0_i32_0 = arith.constant 0 : i32
    return %arg0, %c0_i32 : i32, i32
  }
}

</mosaic_0001>

<llo_original>
// kernel: tpu_custom_call.1
$region0: #{tpu_custom_call.1}
  #allocation0 [shape = 'u32[]', space=smem, size = 0x4, offset = 0x4, fixed_abs, tag = 'smem constant byte address 0x4 - core index']
  #allocation1 [shape = 'u32[72,128]{1,0:T(1,128)}', space=vmem, size = 0x9000, scoped, tag = 'internal scratch']
  %s0 = inlined_call_operand.vmem [shape: f32[16,1], index: 0, kind: input, shape index: {}]
  %s1 = inlined_call_operand.vmem [shape: f32[1,32], index: 1, kind: input, shape index: {}]
  %s2 = inlined_call_operand.vmem [shape: f32[1,32], index: 2, kind: input, shape index: {}]
  %s3 = inlined_call_operand.vmem [shape: f32[16,32], index: 3, kind: input, shape index: {}]
  %s4 = inlined_call_operand.hbm [shape: f32[16,32], index: 4, kind: output, shape index: {}]
  %s5 = sld [smem:[#allocation0]]
  $region49: #{tpu_custom_call.1} parent=0
    _
  %s7 = ssub.s32 1, %s5
  %s8 = scalar_select 0, %s7, %s5
  $region1: #{tpu_custom_call.1} parent=0
    #allocation2 [shape = 'u8[8192]{0}', space=vmem, size = 0x2000, scoped, tag = 'output window, operand 0']
    #allocation3 [shape = 's32[2]{0}', space=sflag, size = 0x8, scoped, tag = 'scoped memory for tpu_custom_call.1']
    %9 = vsyncpa [#allocation3], 0
    %s10 = scalar_lea.sflag [#allocation3], 1
    %11 = vsyncpa %s10, 0
    loop: start=0, step=1, limit=4
    $region2: #{tpu_custom_call.1} parent=1 // loop_pre_header
      _
    $region3: #{tpu_custom_call.1} parent=1 // loop_header
      %s13 = sphi 0, %s17
      %p14 = scmp.ge.s32.totalorder %s13, 4
      %s23 = sphi 0, %s25
      %s26 = sphi 0, %s23
      %s27 = sphi 0, %s26
      %s43 = sphi 0, %s27
      %s47 = sphi 0, %s47
      %s49 = sphi 0, %s47
      %s50 = sphi 0, %s49
      %s64 = sphi 0, %s50
      %s68 = sphi 0, %s68
      %s70 = sphi 0, %s68
      %s71 = sphi 0, %s70
      %s85 = sphi 0, %s71
      %s91 = sphi 0, %s93
      %s94 = sphi 0, %s91
      %s95 = sphi 0, %s94
      %s111 = sphi 0, %s95
      %s117 = sphi 0, %s119
      %s120 = sphi 0, %s117
      %s121 = sphi 0, %s120
      %s137 = sphi 0, %s121
    $region4: #{tpu_custom_call.1} parent=1 // loop_header_branch
      %16 = sbr.rel (%p14) target = $region8
    $region5: #{tpu_custom_call.1} parent=1 // loop_body
      %s18 = ssub.s32 %s13, 1
      %s19 = ssub.s32 %s13, 2
      %s20 = sadd.s32 %s13, 1
      %s21 = ssub.s32 %s13, %s20
      %p22 = scmp.eq.s32.totalorder %s21, 0
      %s24 = sadd.s32 %s23, 1
      %s25 = scalar_select %p22, %s23, %s24
      %p28 = pneg %p22
      %p29 = scmp.eq.s32.totalorder %s13, 1
      %p30 = por %p28, %p29
      %p31 = scmp.ne.s32.totalorder %s23, %s26
      %p32 = scmp.eq.s32.totalorder %s13, 0
      %p33 = por %p31, %p32
      %p34 = scmp.ne.s32.totalorder %s23, %s26
      %p35 = scmp.eq.s32.totalorder %s18, 1
      %p36 = por %p34, %p35
      %p37 = scmp.ne.s32.totalorder %s26, %s27
      %p38 = scmp.eq.s32.totalorder %s18, 0
      %p39 = por %p37, %p38
      %p40 = scmp.ne.s32.totalorder %s26, %s27
      %p41 = scmp.eq.s32.totalorder %s19, 1
      %p42 = por %p40, %p41
      %p44 = scmp.ne.s32.totalorder %s27, %s43
      %p45 = scmp.eq.s32.totalorder %s19, 0
      %p46 = por %p44, %p45
      %s48 = sadd.s32 %s47, 1
      %p51 = scmp.eq.s32.totalorder %s13, 1
      %p52 = scmp.ne.s32.totalorder %s47, %s49
      %p53 = scmp.eq.s32.totalorder %s13, 0
      %p54 = por %p52, %p53
      %p55 = scmp.ne.s32.totalorder %s47, %s49
      %p56 = scmp.eq.s32.totalorder %s18, 1
      %p57 = por %p55, %p56
      %p58 = scmp.ne.s32.totalorder %s49, %s50
      %p59 = scmp.eq.s32.totalorder %s18, 0
      %p60 = por %p58, %p59
      %p61 = scmp.ne.s32.totalorder %s49, %s50
      %p62 = scmp.eq.s32.totalorder %s19, 1
      %p63 = por %p61, %p62
      %p65 = scmp.ne.s32.totalorder %s50, %s64
      %p66 = scmp.eq.s32.totalorder %s19, 0
      %p67 = por %p65, %p66
      %s69 = sadd.s32 %s68, 1
      %p72 = scmp.eq.s32.totalorder %s13, 1
      %p73 = scmp.ne.s32.totalorder %s68, %s70
      %p74 = scmp.eq.s32.totalorder %s13, 0
      %p75 = por %p73, %p74
      %p76 = scmp.ne.s32.totalorder %s68, %s70
      %p77 = scmp.eq.s32.totalorder %s18, 1
      %p78 = por %p76, %p77
      %p79 = scmp.ne.s32.totalorder %s70, %s71
      %p80 = scmp.eq.s32.totalorder %s18, 0
      %p81 = por %p79, %p80
      %p82 = scmp.ne.s32.totalorder %s70, %s71
      %p83 = scmp.eq.s32.totalorder %s19, 1
      %p84 = por %p82, %p83
      %p86 = scmp.ne.s32.totalorder %s71, %s85
      %p87 = scmp.eq.s32.totalorder %s19, 0
      %p88 = por %p86, %p87
      %s89 = ssub.s32 %s13, %s20
      %p90 = scmp.eq.s32.totalorder %s89, 0
      %s92 = sadd.s32 %s91, 1
      %s93 = scalar_select %p90, %s91, %s92
      %p96 = pneg %p90
      %p97 = scmp.eq.s32.totalorder %s13, 1
      %p98 = por %p96, %p97
      %p99 = scmp.ne.s32.totalorder %s91, %s94
      %p100 = scmp.eq.s32.totalorder %s13, 0
      %p101 = por %p99, %p100
      %p102 = scmp.ne.s32.totalorder %s91, %s94
      %p103 = scmp.eq.s32.totalorder %s18, 1
      %p104 = por %p102, %p103
      %p105 = scmp.ne.s32.totalorder %s94, %s95
      %p106 = scmp.eq.s32.totalorder %s18, 0
      %p107 = por %p105, %p106
      %p108 = scmp.ne.s32.totalorder %s94, %s95
      %p109 = scmp.eq.s32.totalorder %s19, 1
      %p110 = por %p108, %p109
      %p112 = scmp.ne.s32.totalorder %s95, %s111
      %p113 = scmp.eq.s32.totalorder %s19, 0
      %p114 = por %p112, %p113
      %s115 = ssub.s32 %s13, %s20
      %p116 = scmp.eq.s32.totalorder %s115, 0
      %s118 = sadd.s32 %s117, 1
      %s119 = scalar_select %p116, %s117, %s118
      %p122 = pneg %p116
      %p123 = scmp.eq.s32.totalorder %s13, 1
      %p124 = por %p122, %p123
      %p125 = scmp.ne.s32.totalorder %s117, %s120
      %p126 = scmp.eq.s32.totalorder %s13, 0
      %p127 = por %p125, %p126
      %p128 = scmp.ne.s32.totalorder %s117, %s120
      %p129 = scmp.eq.s32.totalorder %s18, 1
      %p130 = por %p128, %p129
      %p131 = scmp.ne.s32.totalorder %s120, %s121
      %p132 = scmp.eq.s32.totalorder %s18, 0
      %p133 = por %p131, %p132
      %p134 = scmp.ne.s32.totalorder %s120, %s121
      %p135 = scmp.eq.s32.totalorder %s19, 1
      %p136 = por %p134, %p135
      %p138 = scmp.ne.s32.totalorder %s121, %s137
      %p139 = scmp.eq.s32.totalorder %s19, 0
      %p140 = por %p138, %p139
      %p141 = scmp.le.s32.totalorder 1, %s13
      %p142 = scmp.lt.s32.totalorder %s13, 3
      %p143 = pnand %p141, %p142
      %p144 = pneg %p143
      // Predicated region
      $region9: #{tpu_custom_call.1} parent=5 // pred_check
        _
      $region10: #{tpu_custom_call.1} parent=5 // pred_check_branch
        %146 = sbr.rel (%p143) target = $region12
      $region11: #{tpu_custom_call.1} parent=5 // pred_region
        %s147 = ssub.s32 %s13, 1
        // Predicated region
        $region13: #{tpu_custom_call.1} parent=11 // pred_check
          %p148 = pneg %p60
        $region14: #{tpu_custom_call.1} parent=11 // pred_check_branch
          %150 = sbr.rel (%p148) target = $region16
        $region15: #{tpu_custom_call.1} parent=11 // pred_region
          _
        $region16: #{tpu_custom_call.1} parent=11 // pred_fallthru
          _
        // Predicated region
        $region17: #{tpu_custom_call.1} parent=11 // pred_check
          %p151 = pneg %p81
        $region18: #{tpu_custom_call.1} parent=11 // pred_check_branch
          %153 = sbr.rel (%p151) target = $region20
        $region19: #{tpu_custom_call.1} parent=11 // pred_region
          _
        $region20: #{tpu_custom_call.1} parent=11 // pred_fallthru
          _
      $region12: #{tpu_custom_call.1} parent=5 // pred_fallthru
        _
      %p154 = scmp.lt.s32.totalorder %s13, 2
      // Predicated region
      $region21: #{tpu_custom_call.1} parent=5 // pred_check
        %p155 = pneg %p154
      $region22: #{tpu_custom_call.1} parent=5 // pred_check_branch
        %157 = sbr.rel (%p155) target = $region24
      $region23: #{tpu_custom_call.1} parent=5 // pred_region
        // Predicated region
        $region25: #{tpu_custom_call.1} parent=23 // pred_check
          %p158 = pneg %p33
        $region26: #{tpu_custom_call.1} parent=23 // pred_check_branch
          %160 = sbr.rel (%p158) target = $region28
        $region27: #{tpu_custom_call.1} parent=23 // pred_region
          %p161 = scmp.lt.s32.totalorder %s13, 1
          %s162 = scalar_select %p161, %s13, 1
          %s163 = smul.addr %s162, 8
          %s164 = scalar_lea.vmem %s0, %s163
        $region28: #{tpu_custom_call.1} parent=23 // pred_fallthru
          _
        // Predicated region
        $region29: #{tpu_custom_call.1} parent=23 // pred_check
          %p165 = pneg %p101
        $region30: #{tpu_custom_call.1} parent=23 // pred_check_branch
          %167 = sbr.rel (%p165) target = $region32
        $region31: #{tpu_custom_call.1} parent=23 // pred_region
          %p168 = scmp.lt.s32.totalorder %s13, 1
          %s169 = scalar_select %p168, %s13, 1
          %s170 = smul.addr %s169, 8
          %s171 = scalar_lea.vmem %s3, %s170
        $region32: #{tpu_custom_call.1} parent=23 // pred_fallthru
          _
      $region24: #{tpu_custom_call.1} parent=5 // pred_fallthru
        _
      %p172 = scmp.le.s32.totalorder 1, %s13
      %p173 = scmp.lt.s32.totalorder %s13, 3
      %p174 = pnand %p172, %p173
      %p175 = pneg %p174
      // Predicated region
      $region33: #{tpu_custom_call.1} parent=5 // pred_check
        _
      $region34: #{tpu_custom_call.1} parent=5 // pred_check_branch
        %177 = sbr.rel (%p174) target = $region36
      $region35: #{tpu_custom_call.1} parent=5 // pred_region
        %s178 = ssub.s32 %s13, 1
        %p179 = scmp.lt.s32.totalorder %s18, 1
        %s180 = scalar_select %p179, %s18, 1
        %s181 = smul.addr %s180, 8
        %s182 = scalar_lea.vmem %s0, %s181
        %p183 = pneg %p39
        %p184 = pneg %p36
        %p185 = pneg %p60
        %p186 = pneg %p57
        %p187 = pneg %p81
        %p188 = pneg %p78
        %p189 = scmp.lt.s32.totalorder %s18, 1
        %s190 = scalar_select %p189, %s18, 1
        %s191 = smul.addr %s190, 8
        %s192 = scalar_lea.vmem %s3, %s191
        %p193 = pneg %p107
        %p194 = pneg %p104
        %p195 = pneg %p133
        %p196 = pneg %p130
        %s197 = sand.u32 %s120, 1
        %s198 = scalar_lea.sflag [#allocation3], %s197
        %s199 = sand.u32 %s120, 1
        %s200 = smul.addr %s199, 8
        %s201 = scalar_lea.vmem [#allocation2], %s200
        %p202 = scmp.lt.s32.totalorder %s18, 1
        %s203 = scalar_select %p202, %s18, 1
        %s204 = smul.addr %s203, 8
        %s205 = scalar_lea.vmem %s0, %s204
        %p206 = scmp.lt.s32.totalorder %s18, 1
        %s207 = scalar_select %p206, %s18, 1
        %s208 = smul.addr %s207, 8
        %s209 = scalar_lea.vmem %s3, %s208
        %v210 = vld [vmem:[%s205] sm:$0xff]
        %v211 = vld [vmem:[%s1] sm:$0x1]
        %213 = vset.pattern.permute.xlu0 0
        %214 = vperm.xlu0 %213, %v210
        %v215 = vpop.permute.xlu0 %214
        %v218 = vperm.slane %v211, 0
        %v220 = vmul.f32 %v215, %v218
        %v221 = vld [vmem:[%s2] sm:$0x1]
        %v223 = vperm.slane %v221, 0
        %v225 = vadd.f32 %v220, %v223
        %v226 = vand.u32 2147483647, %v225
        %vm227 = vcmp.le.f32.partialorder %v226, 0.7853982
        %vm228 = vcmp.lt.s32.totalorder %v225, 0
        %v229 = vand.u32 %v225, 2139095040
        %v230 = vshrl.u32 %v229, 23
        %v231 = vsub.s32 %v230, 127
        %v232 = vand.u32 2147483647, %v225
        %v233 = vand.u32 %v232, 8388607
        %v234 = vor.u32 %v233, 8388608
        %v235 = vsub.s32 0, %v234
        %v236 = vadd.s32 %v231, 1
        %vm237 = vcmp.gt.s32.totalorder %v236, 0
        %v238 = vsel %vm237, %v236, 0
        %v239 = vshrl.u32 %v238, 5
        %v240 = vand.u32 %v238, 31
        %v241 = vsub.s32 32, %v240
        %v242 = vshrl.u32 683565275, %v241
        %v243 = vshll.u32 683565275, %v240
        %v244 = vshrl.u32 2475754826, %v241
        %v245 = vor.u32 %v243, %v244
        %v246 = vshll.u32 2475754826, %v240
        %v247 = vshrl.u32 2131351028, %v241
        %v248 = vor.u32 %v246, %v247
        %v249 = vshll.u32 2131351028, %v240
        %v250 = vshrl.u32 2102212464, %v241
        %v251 = vor.u32 %v249, %v250
        %v252 = vshll.u32 2102212464, %v240
        %v253 = vshrl.u32 920167782, %v241
        %v254 = vor.u32 %v252, %v253
        %v255 = vshll.u32 920167782, %v240
        %v256 = vshrl.u32 1326507024, %v241
        %v257 = vor.u32 %v255, %v256
        %vm258 = vcmp.lt.s32.totalorder %v239, 1
        %vm259 = vcmp.lt.s32.totalorder %v239, 2
        %vm260 = vcmp.lt.s32.totalorder %v239, 3
        %vm261 = vcmp.lt.s32.totalorder %v239, 4
        %v262 = vsel %vm258, %v242, %v245
        %v263 = vsel %vm261, %v251, 2102212464
        %v264 = vsel %vm260, %v248, %v263
        %v265 = vsel %vm259, %v262, %v264
        %v266 = vsel %vm258, %v245, %v248
        %v267 = vsel %vm261, %v254, 920167782
        %v268 = vsel %vm260, %v251, %v267
        %v269 = vsel %vm259, %v266, %v268
        %v270 = vsel %vm258, %v248, %v251
        %v271 = vsel %vm261, %v257, 1326507024
        %v272 = vsel %vm260, %v254, %v271
        %v273 = vsel %vm259, %v270, %v272
        %v274 = vshll.u32 %v234, 8
        %v275 = vand.u32 %v274, 65535
        %v276 = vshrl.u32 %v274, 16
        %v277 = vand.u32 %v273, 65535
        %v278 = vshrl.u32 %v273, 16
        %v279 = vmul.u32 %v275, %v277
        %v280 = vmul.u32 %v275, %v278
        %v281 = vmul.u32 %v276, %v277
        %v282 = vmul.u32 %v276, %v278
        %v283 = vshll.u32 %v280, 16
        %v284 = vshrl.u32 %v280, 16
        %v285 = vshll.u32 %v281, 16
        %v286 = vshrl.u32 %v281, 16
        %vm287 = vc.u32 %v279, %v283
        %v288 = vsel %vm287, 1, 0
        %v289 = vadd.s32 %v279, %v283
        %v290 = vadd.s32 %v282, %v288
        %vm291 = vc.u32 %v289, %v285
        %v292 = vsel %vm291, 1, 0
        %v293 = vadd.s32 %v289, %v285
        %v294 = vadd.s32 %v290, %v292
        %v295 = vadd.s32 %v294, %v284
        %v296 = vadd.s32 %v295, %v286
        %v297 = vand.u32 %v274, 65535
        %v298 = vshrl.u32 %v274, 16
        %v299 = vand.u32 %v269, 65535
        %v300 = vshrl.u32 %v269, 16
        %v301 = vmul.u32 %v297, %v299
        %v302 = vmul.u32 %v297, %v300
        %v303 = vmul.u32 %v298, %v299
        %v304 = vmul.u32 %v298, %v300
        %v305 = vshll.u32 %v302, 16
        %v306 = vshrl.u32 %v302, 16
        %v307 = vshll.u32 %v303, 16
        %v308 = vshrl.u32 %v303, 16
        %vm309 = vc.u32 %v301, %v305
        %v310 = vsel %vm309, 1, 0
        %v311 = vadd.s32 %v301, %v305
        %v312 = vadd.s32 %v304, %v310
        %vm313 = vc.u32 %v311, %v307
        %v314 = vsel %vm313, 1, 0
        %v315 = vadd.s32 %v311, %v307
        %v316 = vadd.s32 %v312, %v314
        %v317 = vadd.s32 %v316, %v306
        %v318 = vadd.s32 %v317, %v308
        %v319 = vmul.u32 %v274, %v265
        %v320 = vadd.s32 %v296, %v315
        %vm321 = vc.u32 %v296, %v315
        %v322 = vadd.s32 %v318, 1
        %v323 = vsel %vm321, %v322, %v318
        %v324 = vadd.s32 %v319, %v323
        %v325 = vadd.s32 %v324, 536870912
        %v326 = vshrl.u32 %v325, 30
        %v327 = vshll.u32 %v326, 30
        %v328 = vsub.s32 %v324, %v327
        %vm329 = vcmp.lt.s32.totalorder %v328, 0
        %v330 = vsub.s32 0, %v328
        %v331 = vsel %vm329, %v330, %v328
        %v332 = vclz %v331
        %v333 = vsub.s32 %v332, 2
        %vm334 = vcmp.gt.s32.totalorder 0, %v333
        %v335 = vsel %vm334, 0, %v333
        %v336 = vsub.s32 32, %v335
        %v337 = vshll.u32 %v328, %v335
        %v338 = vshrl.u32 %v320, %v336
        %v339 = vor.u32 %v337, %v338
        %v340 = vsub.s32 4294967266, %v335
        %v341 = vadd.s32 %v340, 127
        %v342 = vshll.u32 %v341, 23
        %v343 = vor.u32 4788187, %v342
        %v344 = vand.u32 2147483647, %v343
        %v346 = vcvt.s32.f32 %v339
        %v347 = vmul.f32 %v346, %v344
        %v348 = vxor.u32 %v347, 2147483648
        %v349 = vsel %vm228, %v348, %v347
        %v350 = vsub.s32 4, %v326
        %v351 = vsel %vm228, %v350, %v326
        %v352 = vsel %vm227, %v225, %v349
        %v353 = vsel %vm227, 0, %v351
        %v354 = vmul.f32 %v352, %v352
        %v355 = vmul.f32 %v354, -0.001358992
        %v356 = vadd.f32 %v355, 0.041655596
        %v357 = vmul.f32 %v354, %v356
        %v358 = vadd.f32 %v357, -0.4999988
        %v359 = vmul.f32 %v354, %v358
        %v360 = vadd.f32 1.0, %v359
        %v361 = vmul.f32 %v352, %v352
        %v362 = vmul.f32 %v361, -0.00019511016
        %v363 = vadd.f32 %v362, 0.008332121
        %v364 = vmul.f32 %v361, %v363
        %v365 = vadd.f32 %v364, -0.16666654
        %v366 = vmul.f32 %v361, %v365
        %v367 = vadd.f32 %v366, 1.0
        %v368 = vmul.f32 %v367, %v352
        %vm369 = vweird.f32 %v225
        %v370 = vadd.s32 %v353, 3
        %v371 = vand.u32 %v370, 3
        %vm372 = vcmp.lt.s32.totalorder %v371, 2
        %vm373 = vcmp.eq.s32.totalorder %v371, 0
        %v374 = vxor.u32 %v368, 2147483648
        %v375 = vsel %vm373, %v360, %v374
        %vm376 = vcmp.eq.s32.totalorder %v371, 2
        %v377 = vxor.u32 %v360, 2147483648
        %v378 = vsel %vm376, %v377, %v368
        %v379 = vsel %vm372, %v375, %v378
        %v380 = vsel %vm369, nan, %v379
        %v381 = vld [vmem:[%s209] sm:$0xff]
        %v382 = vadd.f32 %v381, %v380
        %vm383 = vcmask 261120
        %384 = vst.msk [vmem:[%s201] sm:$0xff] %vm383, %v382
        %s385 = sand.u32 %s120, 1
        %s386 = scalar_lea.sflag [#allocation3], %s385
        %s387 = sand.u32 %s120, 1
        %s388 = smul.addr %s387, 8
        %s389 = scalar_lea.vmem [#allocation2], %s388
        // Predicated region
        $region37: #{tpu_custom_call.1} parent=35 // pred_check
          %p390 = pneg %p130
        $region38: #{tpu_custom_call.1} parent=35 // pred_check_branch
          %392 = sbr.rel (%p390) target = $region40
        $region39: #{tpu_custom_call.1} parent=35 // pred_region
          %394 = vsyncadd %s386, 0
          %s395 = smul.addr %s18, 8
          %s396 = scalar_lea.hbm %s4, %s395
          %s398 = sshll.u32 %s389, 4
          %s399 = int_to_ptr.vmem [resolvable:$true] %s398
          %s400 = sshll.u32 %s396, 4
          %s401 = int_to_ptr.hbm [resolvable:$true] %s400
          %403 = dma.vmem_to_hbm [thread:$0]  %s399, 128, %s401, %s386
        $region40: #{tpu_custom_call.1} parent=35 // pred_fallthru
          _
      $region36: #{tpu_custom_call.1} parent=5 // pred_fallthru
        _
      %p404 = scmp.le.s32.totalorder 2, %s13
      // Predicated region
      $region41: #{tpu_custom_call.1} parent=5 // pred_check
        %p405 = pneg %p404
      $region42: #{tpu_custom_call.1} parent=5 // pred_check_branch
        %407 = sbr.rel (%p405) target = $region44
      $region43: #{tpu_custom_call.1} parent=5 // pred_region
        %s408 = ssub.s32 %s13, 2
        // Predicated region
        $region45: #{tpu_custom_call.1} parent=43 // pred_check
          %p409 = pneg %p136
        $region46: #{tpu_custom_call.1} parent=43 // pred_check_branch
          %411 = sbr.rel (%p409) target = $region48
        $region47: #{tpu_custom_call.1} parent=43 // pred_region
          %s412 = sand.u32 %s121, 1
          %s413 = scalar_lea.sflag [#allocation3], %s412
          %s414 = sand.u32 %s121, 1
          %s415 = smul.addr %s414, 8
          %s416 = scalar_lea.vmem [#allocation2], %s415
          %418 = dma.done %s413, 128
        $region48: #{tpu_custom_call.1} parent=43 // pred_fallthru
          _
      $region44: #{tpu_custom_call.1} parent=5 // pred_fallthru
        _
    $region6: #{tpu_custom_call.1} parent=1 // loop_footer
      %s17 = sadd.s32 1, %s13
    $region7: #{tpu_custom_call.1} parent=1 // loop_footer_branch
      %12 = sbr.rel target = $region3
    $region8: #{tpu_custom_call.1} parent=1 // loop_exit
      _
    %419 = vsyncpa [#allocation3], 1
    %s420 = scalar_lea.sflag [#allocation3], 1
    %421 = vsyncpa %s420, 1

</llo_original>
